<compile_context>
chip_gen: v5e
topology: v5e:2x2
jax: 0.10.0
libtpu: 0.0.40
codegen_flags: <defaults>
</compile_context>

<pallas_src>
import jax
import jax.numpy as jnp
from jax.experimental import pallas as pl
from jax.experimental.pallas import tpu as pltpu


def _backproject_kernel(invk_ref, depth_ref, out_ref):
    # invk_ref : SMEM (B, 9)        scalar-prefetched, flat row-major inv_K[b, :3, :3]
    # depth_ref: VMEM (1, 1, TH, W)
    # out_ref  : VMEM (1, 4, TH, W)
    _, _, th, w = depth_ref.shape
    b = pl.program_id(1)                                   # batch axis is grid axis 1
    d = depth_ref[0, 0]                                    # (TH, W)

    # Pixel coordinates generated in-kernel.  Matches np.meshgrid(indexing='xy')
    # flattened row-major: x = n % W (column), y = n // W (row).
    col = jax.lax.broadcasted_iota(jnp.int32, (th, w), 1)
    row = jax.lax.broadcasted_iota(jnp.int32, (th, w), 0) + pl.program_id(0) * th
    x = col.astype(jnp.float32)
    y = row.astype(jnp.float32)

    for i in range(3):
        k0 = invk_ref[b, 3 * i + 0]
        k1 = invk_ref[b, 3 * i + 1]
        k2 = invk_ref[b, 3 * i + 2]
        # third pix_coords row is all ones -> folded into the scalar k2.
        out_ref[0, i] = (k0 * x + k1 * y + k2) * d         # dense (TH, W) plane store

    out_ref[0, 3] = jnp.ones((th, w), jnp.float32)         # homogeneous ones plane


def _choose_tile_h(B, H, W, *, max_elems=512 * 1024, min_grid_steps=8):
    """Pick TH: multiple of 8, per-step tile <= max_elems, enough tiles to pipeline.

    Constraints (in priority order):
      * cdiv(H, TH) * B >= min_grid_steps where the image allows it (keeps software
        pipelining alive and lets v7x's 2 TensorCores both stream),
      * TH * W <= max_elems  (caps double-buffered VMEM at ~40*max_elems bytes),
      * TH a multiple of 8 (sublane-dense) and TH <= H.
    No divisibility requirement on H: the grid uses cdiv and clips the last block.
    """
    if H <= 8:
        return H                                    # full-extent tiny block
    min_h_tiles = max(2, -(-min_grid_steps // max(B, 1)))      # ceil(min_steps / B)
    th_by_tiles = max(8, (H // min_h_tiles) // 8 * 8)          # guarantees >= min tiles
    th_by_elems = max(8, (max_elems // max(W, 1)) // 8 * 8)    # per-step VMEM cap
    th_by_h = max(8, (H // 8) * 8)                             # do not exceed H
    return max(8, min(th_by_tiles, th_by_elems, th_by_h))


def backproject_depth(depth, inv_K):
    """depth: (B, 1, H, W) f32, inv_K: (B, 4, 4) f32 -> cam_points (B, 4, H*W) f32."""
    B, _, H, W = depth.shape
    depth = depth.astype(jnp.float32)
    invk_flat = inv_K[:, :3, :3].reshape(B, 9).astype(jnp.float32)

    tile_h = _choose_tile_h(B, H, W)
    n_h = pl.cdiv(H, tile_h)
    grid = (n_h, B)                                 # most-steps axis first

    # Double-buffered depth + out tile footprint; raise the scoped-VMEM limit so the
    # tuned tile also compiles on v5e (16 MiB scoped default).  Capped well under
    # v7x's 64 MiB physical VMEM.
    dbuf_bytes = 2 * (1 + 4) * tile_h * W * 4
    vmem_limit = min(48 * 1024 * 1024,
                     max(32 * 1024 * 1024, int(dbuf_bytes * 3 // 2)))

    flops = 15 * B * H * W                          # 3 rows x ~5 VPU flops / px
    bytes_accessed = 20 * B * H * W + 36 * B        # 4 B/px read + 16 B/px write

    out = pl.pallas_call(
        _backproject_kernel,
        out_shape=jax.ShapeDtypeStruct((B, 4, H, W), jnp.float32),
        grid_spec=pltpu.PrefetchScalarGridSpec(
            num_scalar_prefetch=1,                  # invk_flat -> SMEM, whole grid
            grid=grid,
            in_specs=[
                pl.BlockSpec((1, 1, tile_h, W), lambda h, b, invk: (b, 0, h, 0)),
            ],
            out_specs=pl.BlockSpec((1, 4, tile_h, W), lambda h, b, invk: (b, 0, h, 0)),
        ),
        compiler_params=pltpu.CompilerParams(
            dimension_semantics=("parallel", "parallel"),
            vmem_limit_bytes=vmem_limit),
        cost_estimate=pl.CostEstimate(flops=flops, transcendentals=0,
                                      bytes_accessed=bytes_accessed),
    )(invk_flat, depth)

    return out.reshape(B, 4, H * W)                 # free metadata-only reshape


def backproject_depth_ref(depth, inv_K):
    """Pure-JAX reference matching the PyTorch forward."""
    B, _, H, W = depth.shape
    xs = jnp.arange(W, dtype=jnp.float32)
    ys = jnp.arange(H, dtype=jnp.float32)
    xg, yg = jnp.meshgrid(xs, ys, indexing="xy")
    pix = jnp.stack([xg.reshape(-1), yg.reshape(-1),
                     jnp.ones((H * W,), jnp.float32)], axis=0)     # (3, HW)
    cam = jnp.einsum("bij,jn->bin", inv_K[:, :3, :3], pix)         # (B, 3, HW)
    cam = depth.reshape(B, 1, -1) * cam
    ones = jnp.ones((B, 1, H * W), dtype=cam.dtype)
    return jnp.concatenate([cam, ones], axis=1)


if __name__ == "__main__":
    key = jax.random.PRNGKey(0)
    k_depth, k_invk, k_depth2 = jax.random.split(key, 3)

    # Primary small-shape check (exact tiling).
    B, H, W = 2, 16, 16
    depth = jax.random.uniform(k_depth, (B, 1, H, W), dtype=jnp.float32,
                               minval=0.1, maxval=10.0)
    inv_K = (jnp.tile(jnp.eye(4, dtype=jnp.float32)[None], (B, 1, 1))
             + 0.05 * jax.random.normal(k_invk, (B, 4, 4), dtype=jnp.float32))

    out = jax.block_until_ready(backproject_depth(depth, inv_K))
    ref = backproject_depth_ref(depth, inv_K)
    assert out.shape == (B, 4, H * W)
    assert jnp.allclose(out, ref, atol=1e-5, rtol=1e-5), "mismatch vs reference"

    # Ragged-height check: exercises the cdiv grid + clipped final block.
    H2 = 20
    depth2 = jax.random.uniform(k_depth2, (B, 1, H2, W), dtype=jnp.float32,
                                minval=0.1, maxval=10.0)
    out2 = jax.block_until_ready(backproject_depth(depth2, inv_K))
    ref2 = backproject_depth_ref(depth2, inv_K)
    assert out2.shape == (B, 4, H2 * W)
    assert jnp.allclose(out2, ref2, atol=1e-5, rtol=1e-5), "ragged-H mismatch"

    print("KERNEL_OK")
</pallas_src>

<mosaic_0001>
module attributes {stable_mosaic.version = 11 : i64} {
  func.func @_backproject_kernel(%arg0: i32, %arg1: i32, %arg2: memref<2x9xf32, #tpu.memory_space<smem>>, %arg3: memref<1x1x8x16xf32, #tpu.memory_space<vmem>>, %arg4: memref<1x4x8x16xf32, #tpu.memory_space<vmem>>) attributes {dimension_semantics = [#tpu.dimension_semantics<parallel>, #tpu.dimension_semantics<parallel>], iteration_bounds = array<i64: 2, 2>, scalar_prefetch = 1 : i64, scratch_operands = 0 : i64, tpu.core_type = #tpu.core_type<tc>, window_params = [{transform_indices = @transform_0, window_bounds = array<i64: 1, 1, 8, 16>}, {transform_indices = @transform_1, window_bounds = array<i64: 1, 4, 8, 16>}]} {
    %c0 = arith.constant 0 : index
    %c0_0 = arith.constant 0 : index
    %c0_1 = arith.constant 0 : index
    %c0_2 = arith.constant 0 : index
    %0 = vector.load %arg3[%c0, %c0_0, %c0_1, %c0_2] : memref<1x1x8x16xf32, #tpu.memory_space<vmem>>, vector<1x1x8x16xf32>
    %1 = vector.shape_cast %0 : vector<1x1x8x16xf32> to vector<8x16xf32>
    %2 = tpu.iota {dimensions = array<i32: 1>} : vector<8x16xi32>
    %3 = tpu.iota {dimensions = array<i32: 0>} : vector<8x16xi32>
    %c8_i32 = arith.constant 8 : i32
    %4 = arith.muli %arg0, %c8_i32 : i32
    %5 = vector.broadcast %4 : i32 to vector<8x16xi32>
    %6 = arith.addi %3, %5 : vector<8x16xi32>
    %7 = arith.sitofp %2 : vector<8x16xi32> to vector<8x16xf32>
    %8 = arith.sitofp %6 : vector<8x16xi32> to vector<8x16xf32>
    %9 = arith.index_cast %arg1 : i32 to index
    %c0_3 = arith.constant 0 : index
    %10 = memref.load %arg2[%9, %c0_3] : memref<2x9xf32, #tpu.memory_space<smem>>
    %11 = arith.index_cast %arg1 : i32 to index
    %c1 = arith.constant 1 : index
    %12 = memref.load %arg2[%11, %c1] : memref<2x9xf32, #tpu.memory_space<smem>>
    %13 = arith.index_cast %arg1 : i32 to index
    %c2 = arith.constant 2 : index
    %14 = memref.load %arg2[%13, %c2] : memref<2x9xf32, #tpu.memory_space<smem>>
    %15 = vector.broadcast %10 : f32 to vector<8x16xf32>
    %16 = arith.mulf %15, %7 : vector<8x16xf32>
    %17 = vector.broadcast %12 : f32 to vector<8x16xf32>
    %18 = arith.mulf %17, %8 : vector<8x16xf32>
    %19 = arith.addf %16, %18 : vector<8x16xf32>
    %20 = vector.broadcast %14 : f32 to vector<8x16xf32>
    %21 = arith.addf %19, %20 : vector<8x16xf32>
    %22 = arith.mulf %21, %1 : vector<8x16xf32>
    %c0_4 = arith.constant 0 : index
    %c0_5 = arith.constant 0 : index
    %c0_6 = arith.constant 0 : index
    %c0_7 = arith.constant 0 : index
    %23 = vector.load %arg4[%c0_4, %c0_5, %c0_6, %c0_7] : memref<1x4x8x16xf32, #tpu.memory_space<vmem>>, vector<1x1x8x16xf32>
    %24 = vector.shape_cast %23 : vector<1x1x8x16xf32> to vector<8x16xf32>
    %25 = vector.shape_cast %22 : vector<8x16xf32> to vector<1x1x8x16xf32>
    tpu.vector_store %arg4[%c0_4, %c0_5, %c0_6, %c0_7], %25 {strides = array<i32>} : memref<1x4x8x16xf32, #tpu.memory_space<vmem>>, vector<1x1x8x16xf32>,
    %26 = arith.index_cast %arg1 : i32 to index
    %c3 = arith.constant 3 : index
    %27 = memref.load %arg2[%26, %c3] : memref<2x9xf32, #tpu.memory_space<smem>>
    %28 = arith.index_cast %arg1 : i32 to index
    %c4 = arith.constant 4 : index
    %29 = memref.load %arg2[%28, %c4] : memref<2x9xf32, #tpu.memory_space<smem>>
    %30 = arith.index_cast %arg1 : i32 to index
    %c5 = arith.constant 5 : index
    %31 = memref.load %arg2[%30, %c5] : memref<2x9xf32, #tpu.memory_space<smem>>
    %32 = vector.broadcast %27 : f32 to vector<8x16xf32>
    %33 = arith.mulf %32, %7 : vector<8x16xf32>
    %34 = vector.broadcast %29 : f32 to vector<8x16xf32>
    %35 = arith.mulf %34, %8 : vector<8x16xf32>
    %36 = arith.addf %33, %35 : vector<8x16xf32>
    %37 = vector.broadcast %31 : f32 to vector<8x16xf32>
    %38 = arith.addf %36, %37 : vector<8x16xf32>
    %39 = arith.mulf %38, %1 : vector<8x16xf32>
    %c0_8 = arith.constant 0 : index
    %c1_9 = arith.constant 1 : index
    %c0_10 = arith.constant 0 : index
    %c0_11 = arith.constant 0 : index
    %40 = vector.load %arg4[%c0_8, %c1_9, %c0_10, %c0_11] : memref<1x4x8x16xf32, #tpu.memory_space<vmem>>, vector<1x1x8x16xf32>
    %41 = vector.shape_cast %40 : vector<1x1x8x16xf32> to vector<8x16xf32>
    %42 = vector.shape_cast %39 : vector<8x16xf32> to vector<1x1x8x16xf32>
    tpu.vector_store %arg4[%c0_8, %c1_9, %c0_10, %c0_11], %42 {strides = array<i32>} : memref<1x4x8x16xf32, #tpu.memory_space<vmem>>, vector<1x1x8x16xf32>,
    %43 = arith.index_cast %arg1 : i32 to index
    %c6 = arith.constant 6 : index
    %44 = memref.load %arg2[%43, %c6] : memref<2x9xf32, #tpu.memory_space<smem>>
    %45 = arith.index_cast %arg1 : i32 to index
    %c7 = arith.constant 7 : index
    %46 = memref.load %arg2[%45, %c7] : memref<2x9xf32, #tpu.memory_space<smem>>
    %47 = arith.index_cast %arg1 : i32 to index
    %c8 = arith.constant 8 : index
    %48 = memref.load %arg2[%47, %c8] : memref<2x9xf32, #tpu.memory_space<smem>>
    %49 = vector.broadcast %44 : f32 to vector<8x16xf32>
    %50 = arith.mulf %49, %7 : vector<8x16xf32>
    %51 = vector.broadcast %46 : f32 to vector<8x16xf32>
    %52 = arith.mulf %51, %8 : vector<8x16xf32>
    %53 = arith.addf %50, %52 : vector<8x16xf32>
    %54 = vector.broadcast %48 : f32 to vector<8x16xf32>
    %55 = arith.addf %53, %54 : vector<8x16xf32>
    %56 = arith.mulf %55, %1 : vector<8x16xf32>
    %c0_12 = arith.constant 0 : index
    %c2_13 = arith.constant 2 : index
    %c0_14 = arith.constant 0 : index
    %c0_15 = arith.constant 0 : index
    %57 = vector.load %arg4[%c0_12, %c2_13, %c0_14, %c0_15] : memref<1x4x8x16xf32, #tpu.memory_space<vmem>>, vector<1x1x8x16xf32>
    %58 = vector.shape_cast %57 : vector<1x1x8x16xf32> to vector<8x16xf32>
    %59 = vector.shape_cast %56 : vector<8x16xf32> to vector<1x1x8x16xf32>
    tpu.vector_store %arg4[%c0_12, %c2_13, %c0_14, %c0_15], %59 {strides = array<i32>} : memref<1x4x8x16xf32, #tpu.memory_space<vmem>>, vector<1x1x8x16xf32>,
    %cst = arith.constant 1.000000e+00 : f32
    %60 = vector.broadcast %cst : f32 to vector<8x16xf32>
    %c0_16 = arith.constant 0 : index
    %c3_17 = arith.constant 3 : index
    %c0_18 = arith.constant 0 : index
    %c0_19 = arith.constant 0 : index
    %61 = vector.load %arg4[%c0_16, %c3_17, %c0_18, %c0_19] : memref<1x4x8x16xf32, #tpu.memory_space<vmem>>, vector<1x1x8x16xf32>
    %62 = vector.shape_cast %61 : vector<1x1x8x16xf32> to vector<8x16xf32>
    %63 = vector.shape_cast %60 : vector<8x16xf32> to vector<1x1x8x16xf32>
    tpu.vector_store %arg4[%c0_16, %c3_17, %c0_18, %c0_19], %63 {strides = array<i32>} : memref<1x4x8x16xf32, #tpu.memory_space<vmem>>, vector<1x1x8x16xf32>,
    return
  }
  func.func @transform_0(%arg0: i32, %arg1: i32, %arg2: memref<2x9xf32, #tpu.memory_space<smem>>) -> (i32, i32, i32, i32) {
    %c0_i32 = arith.constant 0 : i32
    %c0_i32_0 = arith.constant 0 : i32
    %c0_i32_1 = arith.constant 0 : i32
    return %arg1, %c0_i32, %arg0, %c0_i32_0 : i32, i32, i32, i32
  }
  func.func @transform_1(%arg0: i32, %arg1: i32, %arg2: memref<2x9xf32, #tpu.memory_space<smem>>) -> (i32, i32, i32, i32) {
    %c0_i32 = arith.constant 0 : i32
    %c0_i32_0 = arith.constant 0 : i32
    %c0_i32_1 = arith.constant 0 : i32
    return %arg1, %c0_i32, %arg0, %c0_i32_0 : i32, i32, i32, i32
  }
}

</mosaic_0001>

<llo_original>
// kernel: tpu_custom_call.1
$region0: #{tpu_custom_call.1}
  #allocation0 [shape = 'u32[]', space=smem, size = 0x4, offset = 0x4, fixed_abs, tag = 'smem constant byte address 0x4 - core index']
  #allocation1 [shape = 'u32[72,128]{1,0:T(1,128)}', space=vmem, size = 0x9000, scoped, tag = 'internal scratch']
  #allocation2 [shape = 's32[1]{0}', space=sflag, size = 0x4, scoped, tag = 'scoped memory for tpu_custom_call.1']
  #allocation3 [shape = 'u8[1024]{0}', space=smem, size = 0x400, scoped, tag = 'prefetched SMEM operand 0']
  %s0 = inlined_call_operand.hbm [shape: f32[2,9], index: 0, kind: input, shape index: {}]
  %s1 = inlined_call_operand.hbm [shape: f32[2,1,16,16], index: 1, kind: input, shape index: {}]
  %s2 = inlined_call_operand.hbm [shape: f32[2,4,16,16], index: 2, kind: output, shape index: {}]
  %s3 = sld [smem:[#allocation0]]
  $region41: #{tpu_custom_call.1} parent=0
    _
  %s5 = ssub.s32 1, %s3
  %s6 = scalar_select 0, %s5, %s3
  %s8 = sshll.u32 %s0, 4
  %s9 = int_to_ptr.hbm [resolvable:$true] %s8
  %11 = dma.hbm_to_smem %s9, 32, [#allocation3], [#allocation2]
  %13 = dma.done [#allocation2], 32
  %14 = sfence
  $region1: #{tpu_custom_call.1} parent=0
    #allocation4 [shape = 'u8[8192]{0}', space=vmem, size = 0x2000, scoped, tag = 'input window, operand 1']
    #allocation5 [shape = 's32[2]{0}', space=sflag, size = 0x8, scoped, tag = 'scoped memory for tpu_custom_call.1']
    #allocation6 [shape = 's32[2]{0}', space=sflag, size = 0x8, scoped, tag = 'scoped memory for tpu_custom_call.1']
    #allocation7 [shape = 'u8[32768]{0}', space=vmem, size = 0x8000, scoped, tag = 'output window, operand 0']
    %15 = vsyncpa [#allocation5], 0
    %s16 = scalar_lea.sflag [#allocation5], 1
    %17 = vsyncpa %s16, 0
    %18 = vsyncpa [#allocation6], 0
    %s19 = scalar_lea.sflag [#allocation6], 1
    %20 = vsyncpa %s19, 0
    loop: start=0, step=1, limit=6
    $region2: #{tpu_custom_call.1} parent=1 // loop_pre_header
      _
    $region3: #{tpu_custom_call.1} parent=1 // loop_header
      %s22 = sphi 0, %s26
      %p23 = scmp.ge.s32.totalorder %s22, 6
      %s29 = sphi 0, %s41
      %s30 = sphi 0, %s37
      %s31 = sphi 0, %s29
      %s32 = sphi 0, %s30
      %s33 = sphi 0, %s31
      %s34 = sphi 0, %s32
      %s46 = sphi 0, %s48
      %s49 = sphi 0, %s46
      %s50 = sphi 0, %s49
      %s66 = sphi 0, %s50
      %s74 = sphi 0, %s76
      %s77 = sphi 0, %s74
      %s78 = sphi 0, %s77
      %s94 = sphi 0, %s78
    $region4: #{tpu_custom_call.1} parent=1 // loop_header_branch
      %25 = sbr.rel (%p23) target = $region8
    $region5: #{tpu_custom_call.1} parent=1 // loop_body
      %s27 = ssub.s32 %s22, 1
      %s28 = ssub.s32 %s22, 2
      %s35 = sadd.s32 1, %s30
      %p36 = scmp.ge.s32.totalorder %s35, 2
      %s37 = scalar_select %p36, 0, %s35
      %s38 = sadd.s32 1, %s29
      %s39 = scalar_select %p36, %s38, %s29
      %p40 = scmp.ge.s32.totalorder %s39, 2
      %s41 = scalar_select %p40, 0, %s39
      %s42 = ssub.s32 %s30, %s37
      %s43 = ssub.s32 %s29, %s41
      %s44 = sor.u32 %s42, %s43
      %p45 = scmp.eq.s32.totalorder %s44, 0
      %s47 = sadd.s32 %s46, 1
      %s48 = scalar_select %p45, %s46, %s47
      %p51 = pneg %p45
      %p52 = scmp.eq.s32.totalorder %s22, 3
      %p53 = por %p51, %p52
      %p54 = scmp.ne.s32.totalorder %s46, %s49
      %p55 = scmp.eq.s32.totalorder %s22, 0
      %p56 = por %p54, %p55
      %p57 = scmp.ne.s32.totalorder %s46, %s49
      %p58 = scmp.eq.s32.totalorder %s27, 3
      %p59 = por %p57, %p58
      %p60 = scmp.ne.s32.totalorder %s49, %s50
      %p61 = scmp.eq.s32.totalorder %s27, 0
      %p62 = por %p60, %p61
      %p63 = scmp.ne.s32.totalorder %s49, %s50
      %p64 = scmp.eq.s32.totalorder %s28, 3
      %p65 = por %p63, %p64
      %p67 = scmp.ne.s32.totalorder %s50, %s66
      %p68 = scmp.eq.s32.totalorder %s28, 0
      %p69 = por %p67, %p68
      %s70 = ssub.s32 %s30, %s37
      %s71 = ssub.s32 %s29, %s41
      %s72 = sor.u32 %s70, %s71
      %p73 = scmp.eq.s32.totalorder %s72, 0
      %s75 = sadd.s32 %s74, 1
      %s76 = scalar_select %p73, %s74, %s75
      %p79 = pneg %p73
      %p80 = scmp.eq.s32.totalorder %s22, 3
      %p81 = por %p79, %p80
      %p82 = scmp.ne.s32.totalorder %s74, %s77
      %p83 = scmp.eq.s32.totalorder %s22, 0
      %p84 = por %p82, %p83
      %p85 = scmp.ne.s32.totalorder %s74, %s77
      %p86 = scmp.eq.s32.totalorder %s27, 3
      %p87 = por %p85, %p86
      %p88 = scmp.ne.s32.totalorder %s77, %s78
      %p89 = scmp.eq.s32.totalorder %s27, 0
      %p90 = por %p88, %p89
      %p91 = scmp.ne.s32.totalorder %s77, %s78
      %p92 = scmp.eq.s32.totalorder %s28, 3
      %p93 = por %p91, %p92
      %p95 = scmp.ne.s32.totalorder %s78, %s94
      %p96 = scmp.eq.s32.totalorder %s28, 0
      %p97 = por %p95, %p96
      %p98 = scmp.le.s32.totalorder 1, %s22
      %p99 = scmp.lt.s32.totalorder %s22, 5
      %p100 = pnand %p98, %p99
      %p101 = pneg %p100
      // Predicated region
      $region9: #{tpu_custom_call.1} parent=5 // pred_check
        _
      $region10: #{tpu_custom_call.1} parent=5 // pred_check_branch
        %103 = sbr.rel (%p100) target = $region12
      $region11: #{tpu_custom_call.1} parent=5 // pred_region
        %s104 = ssub.s32 %s22, 1
      $region12: #{tpu_custom_call.1} parent=5 // pred_fallthru
        _
      %p105 = scmp.lt.s32.totalorder %s22, 4
      // Predicated region
      $region13: #{tpu_custom_call.1} parent=5 // pred_check
        %p106 = pneg %p105
      $region14: #{tpu_custom_call.1} parent=5 // pred_check_branch
        %108 = sbr.rel (%p106) target = $region16
      $region15: #{tpu_custom_call.1} parent=5 // pred_region
        // Predicated region
        $region17: #{tpu_custom_call.1} parent=15 // pred_check
          %p109 = pneg %p56
        $region18: #{tpu_custom_call.1} parent=15 // pred_check_branch
          %111 = sbr.rel (%p109) target = $region20
        $region19: #{tpu_custom_call.1} parent=15 // pred_region
          %s112 = sand.u32 %s46, 1
          %s113 = scalar_lea.sflag [#allocation5], %s112
          %s114 = sand.u32 %s46, 1
          %s115 = smul.addr %s114, 8
          %s116 = scalar_lea.vmem [#allocation4], %s115
          %118 = vsyncadd %s113, 0
          %s119 = smul.addr %s30, 2
          %s120 = sadd.s32 %s29, %s119
          %s121 = smul.addr %s120, 8
          %s122 = scalar_lea.hbm %s1, %s121
          %s124 = sshll.u32 %s122, 4
          %s125 = int_to_ptr.hbm [resolvable:$true] %s124
          %s126 = sshll.u32 %s116, 4
          %s127 = int_to_ptr.vmem [resolvable:$true] %s126
          %129 = dma.hbm_to_vmem [thread:$0]  %s125, 128, %s127, %s113
        $region20: #{tpu_custom_call.1} parent=15 // pred_fallthru
          _
      $region16: #{tpu_custom_call.1} parent=5 // pred_fallthru
        _
      %p130 = scmp.le.s32.totalorder 1, %s22
      %p131 = scmp.lt.s32.totalorder %s22, 5
      %p132 = pnand %p130, %p131
      %p133 = pneg %p132
      // Predicated region
      $region21: #{tpu_custom_call.1} parent=5 // pred_check
        _
      $region22: #{tpu_custom_call.1} parent=5 // pred_check_branch
        %135 = sbr.rel (%p132) target = $region24
      $region23: #{tpu_custom_call.1} parent=5 // pred_region
        %s136 = ssub.s32 %s22, 1
        %s137 = sand.u32 %s49, 1
        %s138 = scalar_lea.sflag [#allocation5], %s137
        %s139 = sand.u32 %s49, 1
        %s140 = smul.addr %s139, 8
        %s141 = scalar_lea.vmem [#allocation4], %s140
        // Predicated region
        $region25: #{tpu_custom_call.1} parent=23 // pred_check
          %p142 = pneg %p62
        $region26: #{tpu_custom_call.1} parent=23 // pred_check_branch
          %144 = sbr.rel (%p142) target = $region28
        $region27: #{tpu_custom_call.1} parent=23 // pred_region
          %146 = dma.done %s138, 128
        $region28: #{tpu_custom_call.1} parent=23 // pred_fallthru
          _
        %s147 = sand.u32 %s49, 1
        %s148 = scalar_lea.sflag [#allocation5], %s147
        %s149 = sand.u32 %s49, 1
        %s150 = smul.addr %s149, 8
        %s151 = scalar_lea.vmem [#allocation4], %s150
        %p152 = pneg %p62
        %p153 = pneg %p59
        %p154 = pneg %p90
        %p155 = pneg %p87
        %s156 = sand.u32 %s77, 1
        %s157 = scalar_lea.sflag [#allocation6], %s156
        %s158 = sand.u32 %s77, 1
        %s159 = smul.addr %s158, 32
        %s160 = scalar_lea.vmem [#allocation7], %s159
        %v161 = vld [vmem:[%s141] sm:$0xff]
        %v162 = vlaneseq
        %v163 = vand.u32 %v162, 127
        %v164 = vlaneseq
        %v165 = vshrl.u32 %v164, 7
        %s166 = smul.u32 %s31, 8
        %v167 = vstv %s166
        %v168 = vadd.s32 %v165, %v167
        %v169 = vcvt.s32.f32 %v163
        %v170 = vcvt.s32.f32 %v168
        %s171 = smul.u32 %s32, 128
        %s172 = sld [smem:[#allocation3 + %s171]]
        %s173 = sadd.s32 %s171, 1
        %s174 = sld [smem:[#allocation3 + %s173]]
        %s175 = sadd.s32 %s171, 2
        %s176 = sld [smem:[#allocation3 + %s175]]
        %v177 = vstv %s172
        %v178 = vmul.f32 %v177, %v169
        %v179 = vstv %s174
        %v180 = vmul.f32 %v179, %v170
        %v181 = vadd.f32 %v178, %v180
        %v182 = vstv %s176
        %v183 = vadd.f32 %v181, %v182
        %v184 = vmul.f32 %v183, %v161
        %vm185 = vcmask 130048
        %186 = vst.msk [vmem:[%s160] sm:$0xff] %vm185, %v184
        %s187 = sadd.s32 %s171, 3
        %s188 = sld [smem:[#allocation3 + %s187]]
        %s189 = sadd.s32 %s171, 4
        %s190 = sld [smem:[#allocation3 + %s189]]
        %s191 = sadd.s32 %s171, 5
        %s192 = sld [smem:[#allocation3 + %s191]]
        %v193 = vstv %s188
        %v194 = vmul.f32 %v193, %v169
        %v195 = vstv %s190
        %v196 = vmul.f32 %v195, %v170
        %v197 = vadd.f32 %v194, %v196
        %v198 = vstv %s192
        %v199 = vadd.f32 %v197, %v198
        %v200 = vmul.f32 %v199, %v161
        %s201 = scalar_lea.vmem %s160, 8 [#allocation7]
        %202 = vst.msk [vmem:[%s201] sm:$0xff] %vm185, %v200
        %s203 = sadd.s32 %s171, 6
        %s204 = sld [smem:[#allocation3 + %s203]]
        %s205 = sadd.s32 %s171, 7
        %s206 = sld [smem:[#allocation3 + %s205]]
        %s207 = sadd.s32 %s171, 8
        %s208 = sld [smem:[#allocation3 + %s207]]
        %v209 = vstv %s204
        %v210 = vmul.f32 %v209, %v169
        %v211 = vstv %s206
        %v212 = vmul.f32 %v211, %v170
        %v213 = vadd.f32 %v210, %v212
        %v214 = vstv %s208
        %v215 = vadd.f32 %v213, %v214
        %v216 = vmul.f32 %v215, %v161
        %s217 = scalar_lea.vmem %s160, 16 [#allocation7]
        %218 = vst.msk [vmem:[%s217] sm:$0xff] %vm185, %v216
        %s219 = scalar_lea.vmem %s160, 24 [#allocation7]
        %220 = vst.msk [vmem:[%s219] sm:$0xff] %vm185, 1.0
        %s221 = sand.u32 %s77, 1
        %s222 = scalar_lea.sflag [#allocation6], %s221
        %s223 = sand.u32 %s77, 1
        %s224 = smul.addr %s223, 32
        %s225 = scalar_lea.vmem [#allocation7], %s224
        // Predicated region
        $region29: #{tpu_custom_call.1} parent=23 // pred_check
          %p226 = pneg %p87
        $region30: #{tpu_custom_call.1} parent=23 // pred_check_branch
          %228 = sbr.rel (%p226) target = $region32
        $region31: #{tpu_custom_call.1} parent=23 // pred_region
          %230 = vsyncadd %s222, 0
          %s231 = smul.addr %s32, 8
          %s232 = sadd.s32 %s31, %s231
          %s233 = smul.addr %s232, 8
          %s234 = scalar_lea.hbm %s2, %s233
          %s235 = sshll.u32 %s225, 4
          %s236 = int_to_ptr.vmem [resolvable:$true] %s235
          %s237 = sshll.u32 %s234, 4
          %s238 = int_to_ptr.hbm [resolvable:$true] %s237
          %243 = dma.vmem_to_hbm [thread:$0]  %s236, 512, %s238, %s222, 128, 256, 8
        $region32: #{tpu_custom_call.1} parent=23 // pred_fallthru
          _
      $region24: #{tpu_custom_call.1} parent=5 // pred_fallthru
        _
      %p244 = scmp.le.s32.totalorder 2, %s22
      // Predicated region
      $region33: #{tpu_custom_call.1} parent=5 // pred_check
        %p245 = pneg %p244
      $region34: #{tpu_custom_call.1} parent=5 // pred_check_branch
        %247 = sbr.rel (%p245) target = $region36
      $region35: #{tpu_custom_call.1} parent=5 // pred_region
        %s248 = ssub.s32 %s22, 2
        // Predicated region
        $region37: #{tpu_custom_call.1} parent=35 // pred_check
          %p249 = pneg %p93
        $region38: #{tpu_custom_call.1} parent=35 // pred_check_branch
          %251 = sbr.rel (%p249) target = $region40
        $region39: #{tpu_custom_call.1} parent=35 // pred_region
          %s252 = sand.u32 %s78, 1
          %s253 = scalar_lea.sflag [#allocation6], %s252
          %s254 = sand.u32 %s78, 1
          %s255 = smul.addr %s254, 32
          %s256 = scalar_lea.vmem [#allocation7], %s255
          %258 = dma.done %s253, 512
        $region40: #{tpu_custom_call.1} parent=35 // pred_fallthru
          _
      $region36: #{tpu_custom_call.1} parent=5 // pred_fallthru
        _
    $region6: #{tpu_custom_call.1} parent=1 // loop_footer
      %s26 = sadd.s32 1, %s22
    $region7: #{tpu_custom_call.1} parent=1 // loop_footer_branch
      %21 = sbr.rel target = $region3
    $region8: #{tpu_custom_call.1} parent=1 // loop_exit
      _
    %259 = vsyncpa [#allocation5], 1
    %s260 = scalar_lea.sflag [#allocation5], 1
    %261 = vsyncpa %s260, 1
    %262 = vsyncpa [#allocation6], 1
    %s263 = scalar_lea.sflag [#allocation6], 1
    %264 = vsyncpa %s263, 1

</llo_original>
